<compile_context>
chip_gen: v5e
topology: v5e:2x2
jax: 0.10.0
libtpu: 0.0.40
codegen_flags: <defaults>
</compile_context>

<pallas_src>
import jax
import jax.numpy as jnp
from jax.experimental import pallas as pl
from jax.experimental.pallas import tpu as pltpu


def _round_up(v, m):
    return (v + m - 1) // m * m


def _pick_tile(n, cap, align):
    """Pick tile size (multiple of `align`, <= cap) minimizing padded extent."""
    n_al = _round_up(max(n, 1), align)
    if n_al <= cap:
        return n_al, n_al
    best_t, best_pad = None, None
    t = (cap // align) * align
    while t >= align:
        padded = _round_up(n_al, t)
        if best_pad is None or padded < best_pad:
            best_t, best_pad = t, padded
        t -= align
    return best_t, best_pad


def _vmem_budget_bytes():
    """VMEM budget with headroom; falls back to a value safe on v5e/v6e/v7x."""
    cap = None
    try:
        cap = pltpu.get_tpu_info().vmem_capacity_bytes
    except Exception:
        cap = None
    if not cap:
        cap = 64 * 1024 * 1024  # v7x per-TC VMEM (smallest of the three gens)
    return int(cap * 3 // 4)


def ffn_kernel(x_ref, w1_ref, b1_ref, w2_ref, b2_ref, o_ref, acc_ref):
    h = pl.program_id(2)

    @pl.when(h == 0)
    def _init():
        acc_ref[...] = jnp.zeros_like(acc_ref)

    # First linear for this hidden tile: bf16 x bf16 -> f32 on the MXU.
    a = jnp.dot(x_ref[...], w1_ref[...], preferred_element_type=jnp.float32)
    a = a + b1_ref[...]                                    # (tm, th) + (1, th), f32

    # GELU, tanh approximation (matches the PyTorch GELU module exactly).
    # tanh goes to the EUP slot; the rest is cheap VPU work on the tile.
    c = jnp.float32(0.7978845608028654)                    # sqrt(2/pi)
    g = 0.5 * a * (1.0 + jnp.tanh(c * (a + 0.044715 * (a * a * a))))

    # Second linear: accumulate this hidden tile's contribution (bf16 operands,
    # f32 accumulation in the resident VMEM scratch).
    acc_ref[...] += jnp.dot(g.astype(w2_ref.dtype), w2_ref[...],
                            preferred_element_type=jnp.float32)

    @pl.when(h == pl.num_programs(2) - 1)
    def _finalize():
        o_ref[...] = (acc_ref[...] + b2_ref[...]).astype(o_ref.dtype)


def feed_forward(x, w1, b1, w2, b2, *, compute_dtype=jnp.bfloat16):
    """x: (B, T, d_in); w1: (d_in, H); b1: (H,); w2: (H, d_out); b2: (d_out,)."""
    B, T, d_in = x.shape
    H = w1.shape[1]
    d_out = w2.shape[1]
    M = B * T

    out_dtype = x.dtype
    in_bytes = jnp.dtype(compute_dtype).itemsize
    out_bytes = jnp.dtype(out_dtype).itemsize

    vmem_budget = _vmem_budget_bytes()

    def vmem_est(tm, th, tn):
        x_t = 2 * tm * d_in * in_bytes        # double-buffered x tile
        w1_t = 2 * d_in * th * in_bytes       # double-buffered W1 tile
        b1_t = 2 * th * 4
        w2_t = 2 * th * tn * in_bytes         # double-buffered W2 tile
        b2_t = 2 * tn * 4
        o_t = 2 * tm * tn * out_bytes         # double-buffered output tile
        acc_t = tm * tn * 4                   # resident f32 accumulator
        return x_t + w1_t + b1_t + w2_t + b2_t + o_t + acc_t

    # Tile caps from most to least aggressive; keep the first that fits VMEM.
    tm = th = tn = 8
    M_pad = H_pad = Dout_pad = 8
    for tm_cap, th_cap, tn_cap in ((512, 2048, 1024), (512, 1024, 1024),
                                   (256, 1024, 512), (256, 512, 512),
                                   (128, 512, 256), (128, 256, 128),
                                   (64, 128, 128), (8, 128, 128)):
        tm, M_pad = _pick_tile(M, tm_cap, 8)
        th, H_pad = _pick_tile(H, th_cap, 128)
        tn, Dout_pad = _pick_tile(d_out, tn_cap, 128)
        if vmem_est(tm, th, tn) <= vmem_budget:
            break

    # Megacore (v7x has 2 TCs): ensure >= 2 blocks on a parallel axis if possible.
    if (M_pad // tm) * (Dout_pad // tn) == 1 and tm % 16 == 0:
        tm //= 2

    # --- Cast once to the compute dtype and pad only when required ----------
    xf = x.reshape(M, d_in).astype(compute_dtype)
    w1c = w1.astype(compute_dtype)
    w2c = w2.astype(compute_dtype)
    b1f = b1.astype(jnp.float32).reshape(1, H)
    b2f = b2.astype(jnp.float32).reshape(1, d_out)

    def pad2(a, rows, cols):
        r, c = a.shape
        if r == rows and c == cols:
            return a
        return jnp.pad(a, ((0, rows - r), (0, cols - c)))

    xf_p = pad2(xf, M_pad, d_in)
    w1_p = pad2(w1c, d_in, H_pad)
    b1_p = pad2(b1f, 1, H_pad)
    w2_p = pad2(w2c, H_pad, Dout_pad)
    b2_p = pad2(b2f, 1, Dout_pad)

    grid = (M_pad // tm, Dout_pad // tn, H_pad // th)
    n_i, n_j = grid[0], grid[1]

    # Cost estimate incl. first-matmul recompute per d_out tile and weight
    # re-streaming across row/output tiles.
    flops = 2 * M_pad * d_in * H_pad * n_j + 2 * M_pad * H_pad * Dout_pad
    transcendentals = M_pad * H_pad * n_j
    bytes_accessed = (M_pad * d_in * in_bytes                 # x (resident per row tile)
                      + n_i * n_j * d_in * H_pad * in_bytes   # W1 re-streamed
                      + n_i * H_pad * Dout_pad * in_bytes     # W2 re-streamed per row tile
                      + n_i * n_j * (H_pad + Dout_pad) * 4    # biases
                      + M_pad * Dout_pad * out_bytes)         # output

    out_padded = pl.pallas_call(
        ffn_kernel,
        out_shape=jax.ShapeDtypeStruct((M_pad, Dout_pad), out_dtype),
        grid=grid,
        in_specs=[
            pl.BlockSpec((tm, d_in), lambda i, j, h: (i, 0)),     # x rows
            pl.BlockSpec((d_in, th), lambda i, j, h: (0, h)),     # W1 hidden tile
            pl.BlockSpec((1, th), lambda i, j, h: (0, h)),        # b1 hidden tile
            pl.BlockSpec((th, tn), lambda i, j, h: (h, j)),       # W2 (hidden, out) tile
            pl.BlockSpec((1, tn), lambda i, j, h: (0, j)),        # b2 out tile
        ],
        out_specs=pl.BlockSpec((tm, tn), lambda i, j, h: (i, j)),
        scratch_shapes=[pltpu.VMEM((tm, tn), jnp.float32)],
        compiler_params=pltpu.CompilerParams(
            dimension_semantics=("parallel", "parallel", "arbitrary"),
            vmem_limit_bytes=int(vmem_budget)),
        cost_estimate=pl.CostEstimate(
            flops=int(flops), transcendentals=int(transcendentals),
            bytes_accessed=int(bytes_accessed)),
    )(xf_p, w1_p, b1_p, w2_p, b2_p)

    out = out_padded
    if M_pad != M or Dout_pad != d_out:
        out = out[:M, :d_out]
    return out.reshape(B, T, d_out)


def reference_feed_forward(x, w1, b1, w2, b2):
    def gelu(v):
        return 0.5 * v * (1.0 + jnp.tanh(
            jnp.sqrt(2.0 / jnp.pi) * (v + 0.044715 * v ** 3)))
    return gelu(x @ w1 + b1) @ w2 + b2


if __name__ == "__main__":
    # Small shapes consistent with the module: emb_dim=32 -> hidden=128.
    B, T, emb_dim = 2, 8, 32
    hidden = 4 * emb_dim

    key = jax.random.PRNGKey(0)
    kx, k1, kb1, k2, kb2 = jax.random.split(key, 5)
    x = jax.random.normal(kx, (B, T, emb_dim), dtype=jnp.float32)
    w1 = 0.02 * jax.random.normal(k1, (emb_dim, hidden), dtype=jnp.float32)
    b1 = 0.02 * jax.random.normal(kb1, (hidden,), dtype=jnp.float32)
    w2 = 0.02 * jax.random.normal(k2, (hidden, emb_dim), dtype=jnp.float32)
    b2 = 0.02 * jax.random.normal(kb2, (emb_dim,), dtype=jnp.float32)

    out = feed_forward(x, w1, b1, w2, b2)
    out = jax.block_until_ready(out)

    ref = reference_feed_forward(x, w1, b1, w2, b2)
    assert out.shape == (B, T, emb_dim)
    # bf16 MXU operands with f32 accumulation -> loosened tolerance vs f32 ref.
    assert jnp.allclose(out, ref, atol=2e-2, rtol=2e-2)

    print("KERNEL_OK")
</pallas_src>

<mosaic_0001>
module attributes {stable_mosaic.version = 11 : i64} {
  func.func @ffn_kernel(%arg0: i32, %arg1: i32, %arg2: i32, %arg3: memref<8x32xbf16, #tpu.memory_space<vmem>>, %arg4: memref<32x128xbf16, #tpu.memory_space<vmem>>, %arg5: memref<1x128xf32, #tpu.memory_space<vmem>>, %arg6: memref<128x128xbf16, #tpu.memory_space<vmem>>, %arg7: memref<1x128xf32, #tpu.memory_space<vmem>>, %arg8: memref<8x128xf32, #tpu.memory_space<vmem>>, %arg9: memref<8x128xf32, #tpu.memory_space<vmem>>) attributes {dimension_semantics = [#tpu.dimension_semantics<parallel>, #tpu.dimension_semantics<parallel>, #tpu.dimension_semantics<arbitrary>], iteration_bounds = array<i64: 2, 1, 1>, scalar_prefetch = 0 : i64, scratch_operands = 1 : i64, tpu.core_type = #tpu.core_type<tc>, window_params = [{transform_indices = @transform_0, window_bounds = array<i64: 8, 32>}, {transform_indices = @transform_1, window_bounds = array<i64: 32, 128>}, {transform_indices = @transform_2, window_bounds = array<i64: 1, 128>}, {transform_indices = @transform_3, window_bounds = array<i64: 128, 128>}, {transform_indices = @transform_4, window_bounds = array<i64: 1, 128>}, {transform_indices = @transform_5, window_bounds = array<i64: 8, 128>}]} {
    %c0_i32 = arith.constant 0 : i32
    %0 = arith.cmpi eq, %arg2, %c0_i32 : i32
    %1 = arith.extui %0 : i1 to i32
    %c0_i32_0 = arith.constant 0 : i32
    %2 = arith.cmpi ne, %1, %c0_i32_0 : i32
    scf.if %2 {
      %cst_19 = arith.constant 0.000000e+00 : f32
      %31 = vector.broadcast %cst_19 : f32 to vector<8x128xf32>
      %c0_20 = arith.constant 0 : index
      %c0_21 = arith.constant 0 : index
      %32 = vector.load %arg9[%c0_20, %c0_21] : memref<8x128xf32, #tpu.memory_space<vmem>>, vector<8x128xf32>
      tpu.vector_store %arg9[%c0_20, %c0_21], %31 {strides = array<i32>} : memref<8x128xf32, #tpu.memory_space<vmem>>, vector<8x128xf32>,
    } else {
    }
    %c0 = arith.constant 0 : index
    %c0_1 = arith.constant 0 : index
    %3 = vector.load %arg3[%c0, %c0_1] : memref<8x32xbf16, #tpu.memory_space<vmem>>, vector<8x32xbf16>
    %c0_2 = arith.constant 0 : index
    %c0_3 = arith.constant 0 : index
    %4 = vector.load %arg4[%c0_2, %c0_3] : memref<32x128xbf16, #tpu.memory_space<vmem>>, vector<32x128xbf16>
    %cst = arith.constant dense<0.000000e+00> : vector<8x128xf32>
    %5 = tpu.matmul %3, %4, %cst {dimension_numbers = #tpu.dot_dimension_numbers<[1], [0], [0], [1], [0, 0, 1, 1], [], []>} : vector<8x32xbf16>, vector<32x128xbf16>, vector<8x128xf32> -> vector<8x128xf32>
    %c0_4 = arith.constant 0 : index
    %c0_5 = arith.constant 0 : index
    %6 = vector.load %arg5[%c0_4, %c0_5] : memref<1x128xf32, #tpu.memory_space<vmem>>, vector<1x128xf32>
    %7 = vector.broadcast %6 : vector<1x128xf32> to vector<8x128xf32>
    %8 = arith.addf %5, %7 : vector<8x128xf32>
    %cst_6 = arith.constant 5.000000e-01 : f32
    %9 = vector.broadcast %cst_6 : f32 to vector<8x128xf32>
    %10 = arith.mulf %9, %8 : vector<8x128xf32>
    %11 = arith.mulf %8, %8 : vector<8x128xf32>
    %12 = arith.mulf %11, %8 : vector<8x128xf32>
    %cst_7 = arith.constant 4.471500e-02 : f32
    %13 = vector.broadcast %cst_7 : f32 to vector<8x128xf32>
    %14 = arith.mulf %13, %12 : vector<8x128xf32>
    %15 = arith.addf %8, %14 : vector<8x128xf32>
    %cst_8 = arith.constant 0.797884583 : f32
    %16 = vector.broadcast %cst_8 : f32 to vector<8x128xf32>
    %17 = arith.mulf %16, %15 : vector<8x128xf32>
    %18 = math.tanh %17 : vector<8x128xf32>
    %cst_9 = arith.constant 1.000000e+00 : f32
    %19 = vector.broadcast %cst_9 : f32 to vector<8x128xf32>
    %20 = arith.addf %19, %18 : vector<8x128xf32>
    %21 = arith.mulf %10, %20 : vector<8x128xf32>
    %c0_10 = arith.constant 0 : index
    %c0_11 = arith.constant 0 : index
    %22 = vector.load %arg9[%c0_10, %c0_11] : memref<8x128xf32, #tpu.memory_space<vmem>>, vector<8x128xf32>
    %23 = arith.truncf %21 : vector<8x128xf32> to vector<8x128xbf16>
    %c0_12 = arith.constant 0 : index
    %c0_13 = arith.constant 0 : index
    %24 = vector.load %arg6[%c0_12, %c0_13] : memref<128x128xbf16, #tpu.memory_space<vmem>>, vector<128x128xbf16>
    %cst_14 = arith.constant dense<0.000000e+00> : vector<8x128xf32>
    %25 = tpu.matmul %23, %24, %cst_14 {dimension_numbers = #tpu.dot_dimension_numbers<[1], [0], [0], [1], [0, 0, 1, 1], [], []>} : vector<8x128xbf16>, vector<128x128xbf16>, vector<8x128xf32> -> vector<8x128xf32>
    %26 = arith.addf %22, %25 : vector<8x128xf32>
    %c0_15 = arith.constant 0 : index
    %c0_16 = arith.constant 0 : index
    %27 = vector.load %arg9[%c0_15, %c0_16] : memref<8x128xf32, #tpu.memory_space<vmem>>, vector<8x128xf32>
    tpu.vector_store %arg9[%c0_15, %c0_16], %26 {strides = array<i32>} : memref<8x128xf32, #tpu.memory_space<vmem>>, vector<8x128xf32>,
    %c0_i32_17 = arith.constant 0 : i32
    %28 = arith.cmpi eq, %arg2, %c0_i32_17 : i32
    %29 = arith.extui %28 : i1 to i32
    %c0_i32_18 = arith.constant 0 : i32
    %30 = arith.cmpi ne, %29, %c0_i32_18 : i32
    scf.if %30 {
      %c0_19 = arith.constant 0 : index
      %c0_20 = arith.constant 0 : index
      %31 = vector.load %arg9[%c0_19, %c0_20] : memref<8x128xf32, #tpu.memory_space<vmem>>, vector<8x128xf32>
      %c0_21 = arith.constant 0 : index
      %c0_22 = arith.constant 0 : index
      %32 = vector.load %arg7[%c0_21, %c0_22] : memref<1x128xf32, #tpu.memory_space<vmem>>, vector<1x128xf32>
      %33 = vector.broadcast %32 : vector<1x128xf32> to vector<8x128xf32>
      %34 = arith.addf %31, %33 : vector<8x128xf32>
      %c0_23 = arith.constant 0 : index
      %c0_24 = arith.constant 0 : index
      %35 = vector.load %arg8[%c0_23, %c0_24] : memref<8x128xf32, #tpu.memory_space<vmem>>, vector<8x128xf32>
      tpu.vector_store %arg8[%c0_23, %c0_24], %34 {strides = array<i32>} : memref<8x128xf32, #tpu.memory_space<vmem>>, vector<8x128xf32>,
    } else {
    }
    return
  }
  func.func @transform_0(%arg0: i32, %arg1: i32, %arg2: i32) -> (i32, i32) {
    %c0_i32 = arith.constant 0 : i32
    %c0_i32_0 = arith.constant 0 : i32
    return %arg0, %c0_i32 : i32, i32
  }
  func.func @transform_1(%arg0: i32, %arg1: i32, %arg2: i32) -> (i32, i32) {
    %c0_i32 = arith.constant 0 : i32
    %c0_i32_0 = arith.constant 0 : i32
    return %c0_i32, %arg2 : i32, i32
  }
  func.func @transform_2(%arg0: i32, %arg1: i32, %arg2: i32) -> (i32, i32) {
    %c0_i32 = arith.constant 0 : i32
    %c0_i32_0 = arith.constant 0 : i32
    return %c0_i32, %arg2 : i32, i32
  }
  func.func @transform_3(%arg0: i32, %arg1: i32, %arg2: i32) -> (i32, i32) {
    %c0_i32 = arith.constant 0 : i32
    return %arg2, %arg1 : i32, i32
  }
  func.func @transform_4(%arg0: i32, %arg1: i32, %arg2: i32) -> (i32, i32) {
    %c0_i32 = arith.constant 0 : i32
    %c0_i32_0 = arith.constant 0 : i32
    return %c0_i32, %arg1 : i32, i32
  }
  func.func @transform_5(%arg0: i32, %arg1: i32, %arg2: i32) -> (i32, i32) {
    %c0_i32 = arith.constant 0 : i32
    return %arg0, %arg1 : i32, i32
  }
}

</mosaic_0001>

<llo_original>
// kernel: tpu_custom_call.1
$region0: #{tpu_custom_call.1}
  #allocation0 [shape = 'u32[]', space=smem, size = 0x4, offset = 0x4, fixed_abs, tag = 'smem constant byte address 0x4 - core index']
  #allocation1 [shape = 'u32[72,128]{1,0:T(1,128)}', space=vmem, size = 0x9000, scoped, tag = 'internal scratch']
  #allocation2 [shape = 'f32[8,128]{1,0:T(8,128)}', space=vmem, size = 0x1000, scoped, tag = 'scratch operand']
  %s0 = inlined_call_operand.hbm [shape: bf16[16,32], index: 0, kind: input, shape index: {}]
  %s1 = inlined_call_operand.hbm [shape: bf16[32,128], index: 1, kind: input, shape index: {}]
  %s2 = inlined_call_operand.vmem [shape: f32[1,128], index: 2, kind: input, shape index: {}]
  %s3 = inlined_call_operand.hbm [shape: bf16[128,128], index: 3, kind: input, shape index: {}]
  %s4 = inlined_call_operand.vmem [shape: f32[1,128], index: 4, kind: input, shape index: {}]
  %s5 = inlined_call_operand.hbm [shape: f32[16,128], index: 5, kind: output, shape index: {}]
  %s6 = sld [smem:[#allocation0]]
  $region73: #{tpu_custom_call.1} parent=0
    _
  %s8 = ssub.s32 1, %s6
  %s9 = scalar_select 0, %s8, %s6
  $region1: #{tpu_custom_call.1} parent=0
    #allocation3 [shape = 'u8[4096]{0}', space=vmem, size = 0x1000, scoped, tag = 'input window, operand 0']
    #allocation4 [shape = 's32[2]{0}', space=sflag, size = 0x8, scoped, tag = 'scoped memory for tpu_custom_call.1']
    #allocation5 [shape = 's32[2]{0}', space=sflag, size = 0x8, scoped, tag = 'scoped memory for tpu_custom_call.1']
    #allocation6 [shape = 'u8[8192]{0}', space=vmem, size = 0x2000, scoped, tag = 'input window, operand 1, single buffered']
    #allocation7 [shape = 's32[1]{0}', space=sflag, size = 0x4, scoped, tag = 'scoped memory for tpu_custom_call.1']
    #allocation8 [shape = 'u8[32768]{0}', space=vmem, size = 0x8000, scoped, tag = 'input window, operand 3, single buffered']
    #allocation9 [shape = 'u8[8192]{0}', space=vmem, size = 0x2000, scoped, tag = 'output window, operand 0']
    %10 = vsyncpa [#allocation4], 0
    %s11 = scalar_lea.sflag [#allocation4], 1
    %12 = vsyncpa %s11, 0
    %13 = vsyncpa [#allocation7], 0
    %14 = vsyncpa [#allocation5], 0
    %s15 = scalar_lea.sflag [#allocation5], 1
    %16 = vsyncpa %s15, 0
    loop: start=0, step=1, limit=4
    $region2: #{tpu_custom_call.1} parent=1 // loop_pre_header
      _
    $region3: #{tpu_custom_call.1} parent=1 // loop_header
      %s18 = sphi 0, %s22
      %p19 = scmp.ge.s32.totalorder %s18, 4
      %s25 = sphi 0, %s44
      %s26 = sphi 0, %s40
      %s27 = sphi 0, %s36
      %s28 = sphi 0, %s25
      %s29 = sphi 0, %s26
      %s30 = sphi 0, %s27
      %s31 = sphi 0, %s28
      %s32 = sphi 0, %s29
      %s33 = sphi 0, %s30
      %s47 = sphi 0, %s49
      %s50 = sphi 0, %s47
      %s51 = sphi 0, %s50
      %s67 = sphi 0, %s51
      %s73 = sphi 0, %s75
      %s76 = sphi 0, %s73
      %s77 = sphi 0, %s76
      %s93 = sphi 0, %s77
      %s99 = sphi 0, %s101
      %s102 = sphi 0, %s99
      %s103 = sphi 0, %s102
      %s119 = sphi 0, %s103
      %s127 = sphi 0, %s129
      %s130 = sphi 0, %s127
      %s131 = sphi 0, %s130
      %s147 = sphi 0, %s131
      %s153 = sphi 0, %s155
      %s156 = sphi 0, %s153
      %s157 = sphi 0, %s156
      %s173 = sphi 0, %s157
      %s181 = sphi 0, %s183
      %s184 = sphi 0, %s181
      %s185 = sphi 0, %s184
      %s201 = sphi 0, %s185
    $region4: #{tpu_custom_call.1} parent=1 // loop_header_branch
      %21 = sbr.rel (%p19) target = $region8
    $region5: #{tpu_custom_call.1} parent=1 // loop_body
      %s23 = ssub.s32 %s18, 1
      %s24 = ssub.s32 %s18, 2
      %s34 = sadd.s32 1, %s27
      %p35 = scmp.ge.s32.totalorder %s34, 1
      %s36 = scalar_select %p35, 0, %s34
      %s37 = sadd.s32 1, %s26
      %s38 = scalar_select %p35, %s37, %s26
      %p39 = scmp.ge.s32.totalorder %s38, 1
      %s40 = scalar_select %p39, 0, %s38
      %s41 = sadd.s32 1, %s25
      %s42 = scalar_select %p39, %s41, %s25
      %p43 = scmp.ge.s32.totalorder %s42, 2
      %s44 = scalar_select %p43, 0, %s42
      %s45 = ssub.s32 %s25, %s44
      %p46 = scmp.eq.s32.totalorder %s45, 0
      %s48 = sadd.s32 %s47, 1
      %s49 = scalar_select %p46, %s47, %s48
      %p52 = pneg %p46
      %p53 = scmp.eq.s32.totalorder %s18, 1
      %p54 = por %p52, %p53
      %p55 = scmp.ne.s32.totalorder %s47, %s50
      %p56 = scmp.eq.s32.totalorder %s18, 0
      %p57 = por %p55, %p56
      %p58 = scmp.ne.s32.totalorder %s47, %s50
      %p59 = scmp.eq.s32.totalorder %s23, 1
      %p60 = por %p58, %p59
      %p61 = scmp.ne.s32.totalorder %s50, %s51
      %p62 = scmp.eq.s32.totalorder %s23, 0
      %p63 = por %p61, %p62
      %p64 = scmp.ne.s32.totalorder %s50, %s51
      %p65 = scmp.eq.s32.totalorder %s24, 1
      %p66 = por %p64, %p65
      %p68 = scmp.ne.s32.totalorder %s51, %s67
      %p69 = scmp.eq.s32.totalorder %s24, 0
      %p70 = por %p68, %p69
      %s71 = ssub.s32 %s27, %s36
      %p72 = scmp.eq.s32.totalorder %s71, 0
      %s74 = sadd.s32 %s73, 1
      %s75 = scalar_select %p72, %s73, %s74
      %p78 = pneg %p72
      %p79 = scmp.eq.s32.totalorder %s18, 1
      %p80 = por %p78, %p79
      %p81 = scmp.ne.s32.totalorder %s73, %s76
      %p82 = scmp.eq.s32.totalorder %s18, 0
      %p83 = por %p81, %p82
      %p84 = scmp.ne.s32.totalorder %s73, %s76
      %p85 = scmp.eq.s32.totalorder %s23, 1
      %p86 = por %p84, %p85
      %p87 = scmp.ne.s32.totalorder %s76, %s77
      %p88 = scmp.eq.s32.totalorder %s23, 0
      %p89 = por %p87, %p88
      %p90 = scmp.ne.s32.totalorder %s76, %s77
      %p91 = scmp.eq.s32.totalorder %s24, 1
      %p92 = por %p90, %p91
      %p94 = scmp.ne.s32.totalorder %s77, %s93
      %p95 = scmp.eq.s32.totalorder %s24, 0
      %p96 = por %p94, %p95
      %s97 = ssub.s32 %s27, %s36
      %p98 = scmp.eq.s32.totalorder %s97, 0
      %s100 = sadd.s32 %s99, 1
      %s101 = scalar_select %p98, %s99, %s100
      %p104 = pneg %p98
      %p105 = scmp.eq.s32.totalorder %s18, 1
      %p106 = por %p104, %p105
      %p107 = scmp.ne.s32.totalorder %s99, %s102
      %p108 = scmp.eq.s32.totalorder %s18, 0
      %p109 = por %p107, %p108
      %p110 = scmp.ne.s32.totalorder %s99, %s102
      %p111 = scmp.eq.s32.totalorder %s23, 1
      %p112 = por %p110, %p111
      %p113 = scmp.ne.s32.totalorder %s102, %s103
      %p114 = scmp.eq.s32.totalorder %s23, 0
      %p115 = por %p113, %p114
      %p116 = scmp.ne.s32.totalorder %s102, %s103
      %p117 = scmp.eq.s32.totalorder %s24, 1
      %p118 = por %p116, %p117
      %p120 = scmp.ne.s32.totalorder %s103, %s119
      %p121 = scmp.eq.s32.totalorder %s24, 0
      %p122 = por %p120, %p121
      %s123 = ssub.s32 %s27, %s36
      %s124 = ssub.s32 %s26, %s40
      %s125 = sor.u32 %s123, %s124
      %p126 = scmp.eq.s32.totalorder %s125, 0
      %s128 = sadd.s32 %s127, 1
      %s129 = scalar_select %p126, %s127, %s128
      %p132 = pneg %p126
      %p133 = scmp.eq.s32.totalorder %s18, 1
      %p134 = por %p132, %p133
      %p135 = scmp.ne.s32.totalorder %s127, %s130
      %p136 = scmp.eq.s32.totalorder %s18, 0
      %p137 = por %p135, %p136
      %p138 = scmp.ne.s32.totalorder %s127, %s130
      %p139 = scmp.eq.s32.totalorder %s23, 1
      %p140 = por %p138, %p139
      %p141 = scmp.ne.s32.totalorder %s130, %s131
      %p142 = scmp.eq.s32.totalorder %s23, 0
      %p143 = por %p141, %p142
      %p144 = scmp.ne.s32.totalorder %s130, %s131
      %p145 = scmp.eq.s32.totalorder %s24, 1
      %p146 = por %p144, %p145
      %p148 = scmp.ne.s32.totalorder %s131, %s147
      %p149 = scmp.eq.s32.totalorder %s24, 0
      %p150 = por %p148, %p149
      %s151 = ssub.s32 %s26, %s40
      %p152 = scmp.eq.s32.totalorder %s151, 0
      %s154 = sadd.s32 %s153, 1
      %s155 = scalar_select %p152, %s153, %s154
      %p158 = pneg %p152
      %p159 = scmp.eq.s32.totalorder %s18, 1
      %p160 = por %p158, %p159
      %p161 = scmp.ne.s32.totalorder %s153, %s156
      %p162 = scmp.eq.s32.totalorder %s18, 0
      %p163 = por %p161, %p162
      %p164 = scmp.ne.s32.totalorder %s153, %s156
      %p165 = scmp.eq.s32.totalorder %s23, 1
      %p166 = por %p164, %p165
      %p167 = scmp.ne.s32.totalorder %s156, %s157
      %p168 = scmp.eq.s32.totalorder %s23, 0
      %p169 = por %p167, %p168
      %p170 = scmp.ne.s32.totalorder %s156, %s157
      %p171 = scmp.eq.s32.totalorder %s24, 1
      %p172 = por %p170, %p171
      %p174 = scmp.ne.s32.totalorder %s157, %s173
      %p175 = scmp.eq.s32.totalorder %s24, 0
      %p176 = por %p174, %p175
      %s177 = ssub.s32 %s25, %s44
      %s178 = ssub.s32 %s26, %s40
      %s179 = sor.u32 %s177, %s178
      %p180 = scmp.eq.s32.totalorder %s179, 0
      %s182 = sadd.s32 %s181, 1
      %s183 = scalar_select %p180, %s181, %s182
      %p186 = pneg %p180
      %p187 = scmp.eq.s32.totalorder %s18, 1
      %p188 = por %p186, %p187
      %p189 = scmp.ne.s32.totalorder %s181, %s184
      %p190 = scmp.eq.s32.totalorder %s18, 0
      %p191 = por %p189, %p190
      %p192 = scmp.ne.s32.totalorder %s181, %s184
      %p193 = scmp.eq.s32.totalorder %s23, 1
      %p194 = por %p192, %p193
      %p195 = scmp.ne.s32.totalorder %s184, %s185
      %p196 = scmp.eq.s32.totalorder %s23, 0
      %p197 = por %p195, %p196
      %p198 = scmp.ne.s32.totalorder %s184, %s185
      %p199 = scmp.eq.s32.totalorder %s24, 1
      %p200 = por %p198, %p199
      %p202 = scmp.ne.s32.totalorder %s185, %s201
      %p203 = scmp.eq.s32.totalorder %s24, 0
      %p204 = por %p202, %p203
      %p205 = scmp.le.s32.totalorder 1, %s18
      %p206 = scmp.lt.s32.totalorder %s18, 3
      %p207 = pnand %p205, %p206
      %p208 = pneg %p207
      // Predicated region
      $region9: #{tpu_custom_call.1} parent=5 // pred_check
        _
      $region10: #{tpu_custom_call.1} parent=5 // pred_check_branch
        %210 = sbr.rel (%p207) target = $region12
      $region11: #{tpu_custom_call.1} parent=5 // pred_region
        %s211 = ssub.s32 %s18, 1
        // Predicated region
        $region13: #{tpu_custom_call.1} parent=11 // pred_check
          %p212 = pneg %p89
        $region14: #{tpu_custom_call.1} parent=11 // pred_check_branch
          %214 = sbr.rel (%p212) target = $region16
        $region15: #{tpu_custom_call.1} parent=11 // pred_region
          %216 = vsyncadd [#allocation7], 0
          %s217 = smul.addr %s30, 4
          %s218 = scalar_lea.hbm %s1, %s217
          %s219 = sshll.u32 %s218, 4
          %s220 = int_to_ptr.hbm [resolvable:$true] %s219
          %s221 = sshll.u32 [#allocation6], 4
          %s222 = int_to_ptr.vmem [resolvable:$true] %s221
          %227 = dma.hbm_to_vmem [thread:$0]  %s220, 256, %s222, [#allocation7], 64, 64, 4
        $region16: #{tpu_custom_call.1} parent=11 // pred_fallthru
          _
        // Predicated region
        $region17: #{tpu_custom_call.1} parent=11 // pred_check
          %p228 = pneg %p115
        $region18: #{tpu_custom_call.1} parent=11 // pred_check_branch
          %230 = sbr.rel (%p228) target = $region20
        $region19: #{tpu_custom_call.1} parent=11 // pred_region
          %p231 = scmp.lt.s32.totalorder %s30, 0
          %s232 = scalar_select %p231, %s30, 0
          %s233 = scalar_lea.vmem %s2, %s232
        $region20: #{tpu_custom_call.1} parent=11 // pred_fallthru
          _
        // Predicated region
        $region21: #{tpu_custom_call.1} parent=11 // pred_check
          %p234 = pneg %p143
        $region22: #{tpu_custom_call.1} parent=11 // pred_check_branch
          %236 = sbr.rel (%p234) target = $region24
        $region23: #{tpu_custom_call.1} parent=11 // pred_region
          %s237 = smul.u32 16, %s30
          %239 = vsyncadd [#allocation7], 0
          %s240 = sadd.s32 %s29, %s237
          %s241 = smul.addr %s240, 4
          %s242 = scalar_lea.hbm %s3, %s241
          %s243 = sshll.u32 %s242, 4
          %s244 = int_to_ptr.hbm [resolvable:$true] %s243
          %s245 = sshll.u32 [#allocation8], 4
          %s246 = int_to_ptr.vmem [resolvable:$true] %s245
          %251 = dma.hbm_to_vmem [thread:$0]  %s244, 1024, %s246, [#allocation7], 64, 64, 4
        $region24: #{tpu_custom_call.1} parent=11 // pred_fallthru
          _
        // Predicated region
        $region25: #{tpu_custom_call.1} parent=11 // pred_check
          %p252 = pneg %p169
        $region26: #{tpu_custom_call.1} parent=11 // pred_check_branch
          %254 = sbr.rel (%p252) target = $region28
        $region27: #{tpu_custom_call.1} parent=11 // pred_region
          %p255 = scmp.lt.s32.totalorder %s29, 0
          %s256 = scalar_select %p255, %s29, 0
          %s257 = scalar_lea.vmem %s4, %s256
        $region28: #{tpu_custom_call.1} parent=11 // pred_fallthru
          _
      $region12: #{tpu_custom_call.1} parent=5 // pred_fallthru
        _
      %p258 = scmp.lt.s32.totalorder %s18, 2
      // Predicated region
      $region29: #{tpu_custom_call.1} parent=5 // pred_check
        %p259 = pneg %p258
      $region30: #{tpu_custom_call.1} parent=5 // pred_check_branch
        %261 = sbr.rel (%p259) target = $region32
      $region31: #{tpu_custom_call.1} parent=5 // pred_region
        // Predicated region
        $region33: #{tpu_custom_call.1} parent=31 // pred_check
          %p262 = pneg %p57
        $region34: #{tpu_custom_call.1} parent=31 // pred_check_branch
          %264 = sbr.rel (%p262) target = $region36
        $region35: #{tpu_custom_call.1} parent=31 // pred_region
          %s265 = sand.u32 %s47, 1
          %s266 = scalar_lea.sflag [#allocation4], %s265
          %s267 = sand.u32 %s47, 1
          %s268 = smul.addr %s267, 4
          %s269 = scalar_lea.vmem [#allocation3], %s268
          %271 = vsyncadd %s266, 0
          %s272 = smul.addr %s25, 4
          %s273 = scalar_lea.hbm %s0, %s272
          %s275 = sshll.u32 %s273, 4
          %s276 = int_to_ptr.hbm [resolvable:$true] %s275
          %s277 = sshll.u32 %s269, 4
          %s278 = int_to_ptr.vmem [resolvable:$true] %s277
          %280 = dma.hbm_to_vmem [thread:$0]  %s276, 64, %s278, %s266
        $region36: #{tpu_custom_call.1} parent=31 // pred_fallthru
          _
      $region32: #{tpu_custom_call.1} parent=5 // pred_fallthru
        _
      %p281 = scmp.le.s32.totalorder 1, %s18
      %p282 = scmp.lt.s32.totalorder %s18, 3
      %p283 = pnand %p281, %p282
      %p284 = pneg %p283
      // Predicated region
      $region37: #{tpu_custom_call.1} parent=5 // pred_check
        _
      $region38: #{tpu_custom_call.1} parent=5 // pred_check_branch
        %286 = sbr.rel (%p283) target = $region40
      $region39: #{tpu_custom_call.1} parent=5 // pred_region
        %s287 = ssub.s32 %s18, 1
        %s288 = sand.u32 %s50, 1
        %s289 = scalar_lea.sflag [#allocation4], %s288
        %s290 = sand.u32 %s50, 1
        %s291 = smul.addr %s290, 4
        %s292 = scalar_lea.vmem [#allocation3], %s291
        // Predicated region
        $region41: #{tpu_custom_call.1} parent=39 // pred_check
          %p293 = pneg %p63
        $region42: #{tpu_custom_call.1} parent=39 // pred_check_branch
          %295 = sbr.rel (%p293) target = $region44
        $region43: #{tpu_custom_call.1} parent=39 // pred_region
          %297 = dma.done %s289, 64
        $region44: #{tpu_custom_call.1} parent=39 // pred_fallthru
          _
        // Predicated region
        $region45: #{tpu_custom_call.1} parent=39 // pred_check
          %p298 = pneg %p89
        $region46: #{tpu_custom_call.1} parent=39 // pred_check_branch
          %300 = sbr.rel (%p298) target = $region48
        $region47: #{tpu_custom_call.1} parent=39 // pred_region
          %302 = dma.done [#allocation7], 256
        $region48: #{tpu_custom_call.1} parent=39 // pred_fallthru
          _
        // Predicated region
        $region49: #{tpu_custom_call.1} parent=39 // pred_check
          %p303 = pneg %p143
        $region50: #{tpu_custom_call.1} parent=39 // pred_check_branch
          %305 = sbr.rel (%p303) target = $region52
        $region51: #{tpu_custom_call.1} parent=39 // pred_region
          %307 = dma.done [#allocation7], 1024
        $region52: #{tpu_custom_call.1} parent=39 // pred_fallthru
          _
        %s308 = sand.u32 %s50, 1
        %s309 = scalar_lea.sflag [#allocation4], %s308
        %s310 = sand.u32 %s50, 1
        %s311 = smul.addr %s310, 4
        %s312 = scalar_lea.vmem [#allocation3], %s311
        %p313 = pneg %p63
        %p314 = pneg %p60
        %p315 = pneg %p89
        %p316 = pneg %p86
        %p317 = scmp.lt.s32.totalorder %s30, 0
        %s318 = scalar_select %p317, %s30, 0
        %s319 = scalar_lea.vmem %s2, %s318
        %p320 = pneg %p115
        %p321 = pneg %p112
        %p322 = pneg %p143
        %p323 = pneg %p140
        %p324 = scmp.lt.s32.totalorder %s29, 0
        %s325 = scalar_select %p324, %s29, 0
        %s326 = scalar_lea.vmem %s4, %s325
        %p327 = pneg %p169
        %p328 = pneg %p166
        %p329 = pneg %p197
        %p330 = pneg %p194
        %s331 = sand.u32 %s184, 1
        %s332 = scalar_lea.sflag [#allocation5], %s331
        %s333 = sand.u32 %s184, 1
        %s334 = smul.addr %s333, 8
        %s335 = scalar_lea.vmem [#allocation9], %s334
        %p336 = scmp.lt.s32.totalorder %s30, 0
        %s337 = scalar_select %p336, %s30, 0
        %s338 = scalar_lea.vmem %s2, %s337
        %s339 = smul.u32 16, %s30
        %p340 = scmp.lt.s32.totalorder %s29, 0
        %s341 = scalar_select %p340, %s29, 0
        %s342 = scalar_lea.vmem %s4, %s341
        %p344 = scmp.eq.s32.totalorder %s30, 0
        // Predicated region
        $region53: #{tpu_custom_call.1} parent=39 // pred_check
          %p345 = pneg %p344
        $region54: #{tpu_custom_call.1} parent=39 // pred_check_branch
          %347 = sbr.rel (%p345) target = $region56
        $region55: #{tpu_custom_call.1} parent=39 // pred_region
          %348 = vst [vmem:[#allocation2] sm:$0xff] 0.0
        $region56: #{tpu_custom_call.1} parent=39 // pred_fallthru
          _
        %v349 = vld [vmem:[%s292] sm:$0xf]
        %v350 = vld [vmem:[#allocation6] sm:$0xf]
        %v351 = vld [vmem:[#allocation6 + $0x4] sm:$0xf]
        %v352 = vld [vmem:[#allocation6 + $0x8] sm:$0xf]
        %v353 = vld [vmem:[#allocation6 + $0xc] sm:$0xf]
        %v354 = vld [vmem:[%s338] sm:$0x1]
        %v356 = vperm.slane %v354, 0
        %v362 = vunpack.c.l.b16 %v350
        %v363 = vunpack.c.l.b16 %v351
        %v364 = vunpack.c.l.b16 %v352
        %v365 = vunpack.c.l.b16 %v353
        %v366 = vpack.c.b16 %v363, %v362
        %v367 = vpack.c.b16 %v365, %v364
        %vm370 = vcmask 261120
        %v372 = vsel %vm370, %v349, 0
        %374 = vmatpush.bf16.msra.mxu0 0
        %375 = vmatpush.bf16.msra.mxu0 0
        %376 = vmatpush.bf16.msra.mxu0 0
        %377 = vmatpush.bf16.msra.mxu0 0
        %378 = vmatpush.bf16.msra.mxu0 0
        %379 = vmatpush.bf16.msra.mxu0 0
        %380 = vmatpush.bf16.msra.mxu0 %v367
        %381 = vmatpush.bf16.msra.mxu0 %v366
        %382 = vmatmul.bf16.gmra.mxu0 %v372
        %v383 = vpop.f32.mrf.mxu0
        %v384 = vadd.f32 %v356, %v383
        %v385 = vpop.f32.mrf.mxu0
        %386 = vdwg.mxu0
        %v387 = vmul.f32 %v384, 0.5
        %v388 = vmul.f32 %v384, %v384
        %v389 = vmul.f32 %v388, %v384
        %v390 = vmul.f32 %v389, 0.044715
        %v391 = vadd.f32 %v384, %v390
        %v392 = vmul.f32 %v391, 0.7978846
        %v393 = vtanh.pop %v392
        %v394 = vadd.f32 %v393, 1.0
        %v395 = vmul.f32 %v387, %v394
        %v396 = vld [vmem:[#allocation2] sm:$0xff]
        %v397 = vpack.c.bf16 %v395, %v395
        %v398 = vld [vmem:[#allocation8] sm:$0xf]
        %v399 = vld [vmem:[#allocation8 + $0x4] sm:$0xf]
        %v400 = vld [vmem:[#allocation8 + $0x8] sm:$0xf]
        %v401 = vld [vmem:[#allocation8 + $0xc] sm:$0xf]
        %v402 = vld [vmem:[#allocation8 + $0x10] sm:$0xf]
        %v403 = vld [vmem:[#allocation8 + $0x14] sm:$0xf]
        %v404 = vld [vmem:[#allocation8 + $0x18] sm:$0xf]
        %v405 = vld [vmem:[#allocation8 + $0x1c] sm:$0xf]
        %v406 = vld [vmem:[#allocation8 + $0x20] sm:$0xf]
        %v407 = vld [vmem:[#allocation8 + $0x24] sm:$0xf]
        %v408 = vld [vmem:[#allocation8 + $0x28] sm:$0xf]
        %v409 = vld [vmem:[#allocation8 + $0x2c] sm:$0xf]
        %v410 = vld [vmem:[#allocation8 + $0x30] sm:$0xf]
        %v411 = vld [vmem:[#allocation8 + $0x34] sm:$0xf]
        %v412 = vld [vmem:[#allocation8 + $0x38] sm:$0xf]
        %v413 = vld [vmem:[#allocation8 + $0x3c] sm:$0xf]
        %v430 = vunpack.c.l.b16 %v398
        %v431 = vunpack.c.l.b16 %v399
        %v432 = vunpack.c.l.b16 %v400
        %v433 = vunpack.c.l.b16 %v401
        %v434 = vunpack.c.l.b16 %v402
        %v435 = vunpack.c.l.b16 %v403
        %v436 = vunpack.c.l.b16 %v404
        %v437 = vunpack.c.l.b16 %v405
        %v438 = vunpack.c.l.b16 %v406
        %v439 = vunpack.c.l.b16 %v407
        %v440 = vunpack.c.l.b16 %v408
        %v441 = vunpack.c.l.b16 %v409
        %v442 = vunpack.c.l.b16 %v410
        %v443 = vunpack.c.l.b16 %v411
        %v444 = vunpack.c.l.b16 %v412
        %v445 = vunpack.c.l.b16 %v413
        %v446 = vpack.c.b16 %v431, %v430
        %v447 = vpack.c.b16 %v433, %v432
        %v448 = vpack.c.b16 %v435, %v434
        %v449 = vpack.c.b16 %v437, %v436
        %v450 = vpack.c.b16 %v439, %v438
        %v451 = vpack.c.b16 %v441, %v440
        %v452 = vpack.c.b16 %v443, %v442
        %v453 = vpack.c.b16 %v445, %v444
        %462 = vmatpush.bf16.msra.mxu0 %v453
        %463 = vmatpush.bf16.msra.mxu0 %v452
        %464 = vmatpush.bf16.msra.mxu0 %v451
        %465 = vmatpush.bf16.msra.mxu0 %v450
        %466 = vmatpush.bf16.msra.mxu0 %v449
        %467 = vmatpush.bf16.msra.mxu0 %v448
        %468 = vmatpush.bf16.msra.mxu0 %v447
        %469 = vmatpush.bf16.msra.mxu0 %v446
        %470 = vmatmul.bf16.gmra.mxu0 %v397
        %v471 = vpop.f32.mrf.mxu0
        %v472 = vadd.f32 0.0, %v471
        %v473 = vpop.f32.mrf.mxu0
        %474 = vdwg.mxu0
        %v475 = vadd.f32 %v396, %v472
        %476 = vst [vmem:[#allocation2] sm:$0xff] %v475
        // Predicated region
        $region57: #{tpu_custom_call.1} parent=39 // pred_check
          %p477 = pneg %p344
        $region58: #{tpu_custom_call.1} parent=39 // pred_check_branch
          %479 = sbr.rel (%p477) target = $region60
        $region59: #{tpu_custom_call.1} parent=39 // pred_region
          %v480 = vld [vmem:[#allocation2] sm:$0xff]
          %v481 = vld [vmem:[%s342] sm:$0x1]
          %v483 = vperm.slane %v481, 0
          %v485 = vadd.f32 %v480, %v483
          %486 = vst [vmem:[%s335] sm:$0xff] %v485
        $region60: #{tpu_custom_call.1} parent=39 // pred_fallthru
          _
        %s487 = sand.u32 %s184, 1
        %s488 = scalar_lea.sflag [#allocation5], %s487
        %s489 = sand.u32 %s184, 1
        %s490 = smul.addr %s489, 8
        %s491 = scalar_lea.vmem [#allocation9], %s490
        // Predicated region
        $region61: #{tpu_custom_call.1} parent=39 // pred_check
          %p492 = pneg %p194
        $region62: #{tpu_custom_call.1} parent=39 // pred_check_branch
          %494 = sbr.rel (%p492) target = $region64
        $region63: #{tpu_custom_call.1} parent=39 // pred_region
          %496 = vsyncadd %s488, 0
          %s497 = sadd.s32 %s29, %s28
          %s498 = smul.addr %s497, 8
          %s499 = scalar_lea.hbm %s5, %s498
          %s501 = sshll.u32 %s491, 4
          %s502 = int_to_ptr.vmem [resolvable:$true] %s501
          %s503 = sshll.u32 %s499, 4
          %s504 = int_to_ptr.hbm [resolvable:$true] %s503
          %506 = dma.vmem_to_hbm [thread:$0]  %s502, 128, %s504, %s488
        $region64: #{tpu_custom_call.1} parent=39 // pred_fallthru
          _
      $region40: #{tpu_custom_call.1} parent=5 // pred_fallthru
        _
      %p507 = scmp.le.s32.totalorder 2, %s18
      // Predicated region
      $region65: #{tpu_custom_call.1} parent=5 // pred_check
        %p508 = pneg %p507
      $region66: #{tpu_custom_call.1} parent=5 // pred_check_branch
        %510 = sbr.rel (%p508) target = $region68
      $region67: #{tpu_custom_call.1} parent=5 // pred_region
        %s511 = ssub.s32 %s18, 2
        // Predicated region
        $region69: #{tpu_custom_call.1} parent=67 // pred_check
          %p512 = pneg %p200
        $region70: #{tpu_custom_call.1} parent=67 // pred_check_branch
          %514 = sbr.rel (%p512) target = $region72
        $region71: #{tpu_custom_call.1} parent=67 // pred_region
          %s515 = sand.u32 %s185, 1
          %s516 = scalar_lea.sflag [#allocation5], %s515
          %s517 = sand.u32 %s185, 1
          %s518 = smul.addr %s517, 8
          %s519 = scalar_lea.vmem [#allocation9], %s518
          %521 = dma.done %s516, 128
        $region72: #{tpu_custom_call.1} parent=67 // pred_fallthru
          _
      $region68: #{tpu_custom_call.1} parent=5 // pred_fallthru
        _
    $region6: #{tpu_custom_call.1} parent=1 // loop_footer
      %s22 = sadd.s32 1, %s18
    $region7: #{tpu_custom_call.1} parent=1 // loop_footer_branch
      %17 = sbr.rel target = $region3
    $region8: #{tpu_custom_call.1} parent=1 // loop_exit
      _
    %522 = vsyncpa [#allocation4], 1
    %s523 = scalar_lea.sflag [#allocation4], 1
    %524 = vsyncpa %s523, 1
    %525 = vsyncpa [#allocation7], 1
    %526 = vsyncpa [#allocation5], 1
    %s527 = scalar_lea.sflag [#allocation5], 1
    %528 = vsyncpa %s527, 1

</llo_original>
